<compile_context>
chip_gen: v7x
topology: tpu7x:2x2x1
jax: 0.10.0
libtpu: 0.0.40
codegen_flags: <defaults>
</compile_context>

<pallas_src>
import functools

import jax
import jax.numpy as jnp
import numpy as np
from jax.experimental import pallas as pl
from jax.experimental.pallas import tpu as pltpu

BN_EPS = 1e-5
_VMEM_LIMIT = 32 * 1024 * 1024  # explicit scoped-VMEM budget (safe on v5e/v6e/v7x)


def _round_up(x, m):
    return ((x + m - 1) // m) * m


def _conv_relu_stats_kernel(p_ref, w_ref, y_ref, stats_ref):
    # p_ref:     (TM, Kp)  bf16 im2col patch tile
    # w_ref:     (Kp, Cp)  bf16 conv weight (reshaped/transposed/zero-padded)
    # y_ref:     (TM, Cp)  f32 ReLU(conv) tile
    # stats_ref: (2,  Cp)  f32 resident accumulator: row 0 = sum(y), row 1 = sum(y*y)
    @pl.when(pl.program_id(0) == 0)
    def _():
        stats_ref[...] = jnp.zeros_like(stats_ref)

    y = jnp.maximum(
        jnp.dot(p_ref[...], w_ref[...], preferred_element_type=jnp.float32), 0.0)
    y_ref[...] = y
    s = jnp.sum(y, axis=0, keepdims=True)
    ss = jnp.sum(y * y, axis=0, keepdims=True)
    stats_ref[...] += jnp.concatenate([s, ss], axis=0)


def _bn_apply_kernel(y_ref, scale_ref, shift_ref, o_ref):
    # y_ref: (TM, Cp) f32, scale/shift: (1, Cp) f32, o_ref: (TM, Cp) f32
    o_ref[...] = (y_ref[...] * scale_ref[...] + shift_ref[...]).astype(o_ref.dtype)


def _im2col(x, k, stride, pad):
    # x: (N, C, H, W) NCHW -> patches (N*Ho*Wo, C*k*k); flat index = c*(k*k)+kh*k+kw.
    n, c, h, w = x.shape
    ho = (h + 2 * pad - k) // stride + 1
    wo = (w + 2 * pad - k) // stride + 1
    xp = jnp.pad(x, ((0, 0), (0, 0), (pad, pad), (pad, pad)))
    taps = []
    for kh in range(k):
        for kw in range(k):
            taps.append(xp[:, :, kh:kh + stride * ho:stride, kw:kw + stride * wo:stride])
    p = jnp.stack(taps, axis=2)                                  # (N, C, k*k, Ho, Wo)
    p = jnp.transpose(p, (0, 3, 4, 1, 2)).reshape(n * ho * wo, c * k * k)
    return p, ho, wo


@functools.partial(jax.jit, static_argnames=("k", "stride", "pad", "nchw_output"))
def encoder_block(x, conv_w, gamma, beta, *, k=4, stride=2, pad=1, nchw_output=True):
    """x: (N, Cin, H, W). conv_w: (Cout, Cin, k, k). Returns NCHW (or NHWC)."""
    n, cin, h, w = x.shape
    cout = conv_w.shape[0]

    # TODO(synk): for large Cin, replace im2col with an implicit-GEMM (kh,kw grid
    # axis reading strided slices of the padded input) to avoid the k*k HBM blowup;
    # for Cin=3 the patch matrix is small and this is marginal.
    patches, ho, wo = _im2col(x, k, stride, pad)                 # (M, K)
    m_rows, k_dim = patches.shape

    # Pad contraction / channel dims to the 128-lane width, rows to the row tile.
    k_pad = _round_up(k_dim, 128)
    c_pad = _round_up(cout, 128)
    tm = min(512, _round_up(m_rows, 128))                        # 512-row tiles max
    m_pad = _round_up(m_rows, tm)
    n_tiles = m_pad // tm

    patches_p = jnp.pad(patches.astype(jnp.bfloat16),
                        ((0, m_pad - m_rows), (0, k_pad - k_dim)))
    w2d = conv_w.reshape(cout, k_dim).T.astype(jnp.bfloat16)     # (K, Cout)
    w_p = jnp.pad(w2d, ((0, k_pad - k_dim), (0, c_pad - cout)))

    # ---------------- pass 1: conv (bf16 MXU) + ReLU + fused sum/sumsq -----------
    flops1 = 2 * m_pad * k_pad * c_pad
    bytes1 = patches_p.size * 2 + w_p.size * 2 + m_pad * c_pad * 4 + 2 * c_pad * 4
    y2d, stats = pl.pallas_call(
        _conv_relu_stats_kernel,
        out_shape=(jax.ShapeDtypeStruct((m_pad, c_pad), jnp.float32),
                   jax.ShapeDtypeStruct((2, c_pad), jnp.float32)),
        grid=(n_tiles,),
        in_specs=[
            pl.BlockSpec((tm, k_pad), lambda i: (i, 0)),
            pl.BlockSpec((k_pad, c_pad), lambda i: (0, 0)),
        ],
        out_specs=(
            pl.BlockSpec((tm, c_pad), lambda i: (i, 0)),
            pl.BlockSpec((2, c_pad), lambda i: (0, 0)),          # resident accumulator
        ),
        compiler_params=pltpu.CompilerParams(
            dimension_semantics=("arbitrary",),
            vmem_limit_bytes=_VMEM_LIMIT),
        cost_estimate=pl.CostEstimate(flops=flops1, transcendentals=0,
                                      bytes_accessed=bytes1),
    )(patches_p, w_p)

    # ------------- BN batch stats -> per-channel affine (tiny, stays in XLA) -----
    # Padded rows/channels are exact zeros and contribute nothing to sum/sumsq;
    # divide by the true element count (N*Ho*Wo) so padding never biases the stats.
    inv_m = jnp.float32(1.0 / m_rows)
    mean = stats[0] * inv_m
    var = jnp.maximum(stats[1] * inv_m - mean * mean, 0.0)       # biased var (train)
    inv_std = jax.lax.rsqrt(var + BN_EPS)
    gamma_p = jnp.pad(gamma.astype(jnp.float32), (0, c_pad - cout))
    beta_p = jnp.pad(beta.astype(jnp.float32), (0, c_pad - cout))
    scale = (gamma_p * inv_std).reshape(1, c_pad)
    shift = (beta_p - gamma_p * inv_std * mean).reshape(1, c_pad)
    # TODO(synk): torch train-mode BatchNorm2d also updates running_mean/running_var
    # buffers from (mean, var); those side-effect buffers are not produced here.

    # ---------------- pass 2: normalize, tiled over M, megacore 'parallel' -------
    flops2 = 2 * m_pad * c_pad
    bytes2 = 2 * m_pad * c_pad * 4 + 2 * c_pad * 4
    out2d = pl.pallas_call(
        _bn_apply_kernel,
        out_shape=jax.ShapeDtypeStruct((m_pad, c_pad), jnp.float32),
        grid=(n_tiles,),
        in_specs=[
            pl.BlockSpec((tm, c_pad), lambda i: (i, 0)),
            pl.BlockSpec((1, c_pad), lambda i: (0, 0)),
            pl.BlockSpec((1, c_pad), lambda i: (0, 0)),
        ],
        out_specs=pl.BlockSpec((tm, c_pad), lambda i: (i, 0)),
        compiler_params=pltpu.CompilerParams(
            dimension_semantics=("parallel",),
            vmem_limit_bytes=_VMEM_LIMIT),
        cost_estimate=pl.CostEstimate(flops=flops2, transcendentals=0,
                                      bytes_accessed=bytes2),
    )(y2d, scale, shift)

    out_nhwc = out2d[:m_rows, :cout].reshape(n, ho, wo, cout)
    if nchw_output:
        # NOTE: extra full-activation HBM pass; pass nchw_output=False if the
        # consumer can take channels-last.
        return jnp.transpose(out_nhwc, (0, 3, 1, 2))
    return out_nhwc


def _reference(x, conv_w, gamma, beta, *, stride=2, pad=1):
    y = jax.lax.conv_general_dilated(
        x.astype(jnp.float32), conv_w.astype(jnp.float32),
        window_strides=(stride, stride), padding=[(pad, pad), (pad, pad)],
        dimension_numbers=("NCHW", "OIHW", "NCHW"))
    y = jnp.maximum(y, 0.0)
    mean = jnp.mean(y, axis=(0, 2, 3), keepdims=True)
    var = jnp.mean((y - mean) ** 2, axis=(0, 2, 3), keepdims=True)
    yn = (y - mean) * jax.lax.rsqrt(var + BN_EPS)
    return yn * gamma.reshape(1, -1, 1, 1) + beta.reshape(1, -1, 1, 1)


if __name__ == "__main__":
    key = jax.random.PRNGKey(0)
    kx, kw = jax.random.split(key)

    N, CIN, H, W = 2, 3, 16, 16
    COUT, K = 128, 4

    x = jax.random.normal(kx, (N, CIN, H, W), dtype=jnp.float32)
    # Deterministic Conv2d weight init (kaiming-uniform-like bound), no bias.
    fan_in = CIN * K * K
    bound = 1.0 / np.sqrt(fan_in)
    conv_w = jax.random.uniform(kw, (COUT, CIN, K, K), minval=-bound, maxval=bound,
                                dtype=jnp.float32)
    # BatchNorm2d default init: gamma=1, beta=0.
    gamma = jnp.ones((COUT,), dtype=jnp.float32)
    beta = jnp.zeros((COUT,), dtype=jnp.float32)

    out = encoder_block(x, conv_w, gamma, beta)
    jax.block_until_ready(out)

    # 1) Tight check of kernel logic: reference fed the same bf16-rounded inputs.
    ref_bf16 = _reference(x.astype(jnp.bfloat16).astype(jnp.float32),
                          conv_w.astype(jnp.bfloat16).astype(jnp.float32),
                          gamma, beta)
    np.testing.assert_allclose(np.asarray(out), np.asarray(ref_bf16),
                               atol=5e-3, rtol=5e-3)

    # 2) Module-semantics check vs full-f32 reference (bf16 MXU input tolerance).
    ref = _reference(x, conv_w, gamma, beta)
    np.testing.assert_allclose(np.asarray(out), np.asarray(ref),
                               atol=3e-2, rtol=3e-2)

    print("KERNEL_OK")
</pallas_src>

<mosaic_0001>
module attributes {stable_mosaic.version = 11 : i64} {
  func.func @_conv_relu_stats_kernel(%arg0: i32, %arg1: memref<128x128xbf16, #tpu.memory_space<vmem>>, %arg2: memref<128x128xbf16, #tpu.memory_space<vmem>>, %arg3: memref<128x128xf32, #tpu.memory_space<vmem>>, %arg4: memref<2x128xf32, #tpu.memory_space<vmem>>) attributes {dimension_semantics = [#tpu.dimension_semantics<arbitrary>], iteration_bounds = array<i64: 1>, scalar_prefetch = 0 : i64, scratch_operands = 0 : i64, tpu.core_type = #tpu.core_type<tc>, window_params = [{transform_indices = @transform_0, window_bounds = array<i64: 128, 128>}, {pipeline_mode = #tpu.pipeline_mode<synchronous>, transform_indices = @transform_1, window_bounds = array<i64: 128, 128>}, {transform_indices = @transform_2, window_bounds = array<i64: 128, 128>}, {pipeline_mode = #tpu.pipeline_mode<synchronous>, transform_indices = @transform_3, window_bounds = array<i64: 2, 128>}]} {
    %c0_i32 = arith.constant 0 : i32
    %0 = arith.cmpi eq, %arg0, %c0_i32 : i32
    %1 = arith.extui %0 : i1 to i32
    %c0_i32_0 = arith.constant 0 : i32
    %2 = arith.cmpi ne, %1, %c0_i32_0 : i32
    scf.if %2 {
      %cst_13 = arith.constant 0.000000e+00 : f32
      %18 = vector.broadcast %cst_13 : f32 to vector<2x128xf32>
      %c0_14 = arith.constant 0 : index
      %c0_15 = arith.constant 0 : index
      %19 = vector.load %arg4[%c0_14, %c0_15] : memref<2x128xf32, #tpu.memory_space<vmem>>, vector<2x128xf32>
      tpu.vector_store %arg4[%c0_14, %c0_15], %18 {strides = array<i32>} : memref<2x128xf32, #tpu.memory_space<vmem>>, vector<2x128xf32>,
    } else {
    }
    %c0 = arith.constant 0 : index
    %c0_1 = arith.constant 0 : index
    %3 = vector.load %arg1[%c0, %c0_1] : memref<128x128xbf16, #tpu.memory_space<vmem>>, vector<128x128xbf16>
    %c0_2 = arith.constant 0 : index
    %c0_3 = arith.constant 0 : index
    %4 = vector.load %arg2[%c0_2, %c0_3] : memref<128x128xbf16, #tpu.memory_space<vmem>>, vector<128x128xbf16>
    %cst = arith.constant dense<0.000000e+00> : vector<128x128xf32>
    %5 = tpu.matmul %3, %4, %cst {dimension_numbers = #tpu.dot_dimension_numbers<[1], [0], [0], [1], [0, 0, 1, 1], [], []>} : vector<128x128xbf16>, vector<128x128xbf16>, vector<128x128xf32> -> vector<128x128xf32>
    %cst_4 = arith.constant 0.000000e+00 : f32
    %6 = vector.broadcast %cst_4 : f32 to vector<128x128xf32>
    %7 = arith.maximumf %5, %6 : vector<128x128xf32>
    %c0_5 = arith.constant 0 : index
    %c0_6 = arith.constant 0 : index
    %8 = vector.load %arg3[%c0_5, %c0_6] : memref<128x128xf32, #tpu.memory_space<vmem>>, vector<128x128xf32>
    tpu.vector_store %arg3[%c0_5, %c0_6], %7 {strides = array<i32>} : memref<128x128xf32, #tpu.memory_space<vmem>>, vector<128x128xf32>,
    %cst_7 = arith.constant dense<0.000000e+00> : vector<128xf32>
    %9 = vector.multi_reduction <add>, %7, %cst_7 [0] : vector<128x128xf32> to vector<128xf32>
    %10 = vector.shape_cast %9 : vector<128xf32> to vector<1x128xf32>
    %11 = arith.mulf %7, %7 : vector<128x128xf32>
    %cst_8 = arith.constant dense<0.000000e+00> : vector<128xf32>
    %12 = vector.multi_reduction <add>, %11, %cst_8 [0] : vector<128x128xf32> to vector<128xf32>
    %13 = vector.shape_cast %12 : vector<128xf32> to vector<1x128xf32>
    %c0_9 = arith.constant 0 : index
    %c0_10 = arith.constant 0 : index
    %14 = vector.load %arg4[%c0_9, %c0_10] : memref<2x128xf32, #tpu.memory_space<vmem>>, vector<2x128xf32>
    %15 = tpu.concatenate %10, %13 in 0 : vector<1x128xf32>, vector<1x128xf32> -> vector<2x128xf32>
    %16 = arith.addf %14, %15 : vector<2x128xf32>
    %c0_11 = arith.constant 0 : index
    %c0_12 = arith.constant 0 : index
    %17 = vector.load %arg4[%c0_11, %c0_12] : memref<2x128xf32, #tpu.memory_space<vmem>>, vector<2x128xf32>
    tpu.vector_store %arg4[%c0_11, %c0_12], %16 {strides = array<i32>} : memref<2x128xf32, #tpu.memory_space<vmem>>, vector<2x128xf32>,
    return
  }
  func.func @transform_0(%arg0: i32) -> (i32, i32) {
    %c0_i32 = arith.constant 0 : i32
    %c0_i32_0 = arith.constant 0 : i32
    return %arg0, %c0_i32 : i32, i32
  }
  func.func @transform_1(%arg0: i32) -> (i32, i32) {
    %c0_i32 = arith.constant 0 : i32
    %c0_i32_0 = arith.constant 0 : i32
    %c0_i32_1 = arith.constant 0 : i32
    return %c0_i32, %c0_i32_0 : i32, i32
  }
  func.func @transform_2(%arg0: i32) -> (i32, i32) {
    %c0_i32 = arith.constant 0 : i32
    %c0_i32_0 = arith.constant 0 : i32
    return %arg0, %c0_i32 : i32, i32
  }
  func.func @transform_3(%arg0: i32) -> (i32, i32) {
    %c0_i32 = arith.constant 0 : i32
    %c0_i32_0 = arith.constant 0 : i32
    %c0_i32_1 = arith.constant 0 : i32
    return %c0_i32, %c0_i32_0 : i32, i32
  }
}

module attributes {stable_mosaic.version = 11 : i64} {
  func.func @_bn_apply_kernel(%arg0: i32, %arg1: memref<128x128xf32, #tpu.memory_space<vmem>>, %arg2: memref<1x128xf32, #tpu.memory_space<vmem>>, %arg3: memref<1x128xf32, #tpu.memory_space<vmem>>, %arg4: memref<128x128xf32, #tpu.memory_space<vmem>>) attributes {dimension_semantics = [#tpu.dimension_semantics<parallel>], iteration_bounds = array<i64: 1>, scalar_prefetch = 0 : i64, scratch_operands = 0 : i64, tpu.core_type = #tpu.core_type<tc>, window_params = [{transform_indices = @transform_0, window_bounds = array<i64: 128, 128>}, {pipeline_mode = #tpu.pipeline_mode<synchronous>, transform_indices = @transform_1, window_bounds = array<i64: 1, 128>}, {pipeline_mode = #tpu.pipeline_mode<synchronous>, transform_indices = @transform_2, window_bounds = array<i64: 1, 128>}, {transform_indices = @transform_3, window_bounds = array<i64: 128, 128>}]} {
    %c0 = arith.constant 0 : index
    %c0_0 = arith.constant 0 : index
    %0 = vector.load %arg1[%c0, %c0_0] : memref<128x128xf32, #tpu.memory_space<vmem>>, vector<128x128xf32>
    %c0_1 = arith.constant 0 : index
    %c0_2 = arith.constant 0 : index
    %1 = vector.load %arg2[%c0_1, %c0_2] : memref<1x128xf32, #tpu.memory_space<vmem>>, vector<1x128xf32>
    %2 = vector.broadcast %1 : vector<1x128xf32> to vector<128x128xf32>
    %3 = arith.mulf %0, %2 : vector<128x128xf32>
    %c0_3 = arith.constant 0 : index
    %c0_4 = arith.constant 0 : index
    %4 = vector.load %arg3[%c0_3, %c0_4] : memref<1x128xf32, #tpu.memory_space<vmem>>, vector<1x128xf32>
    %5 = vector.broadcast %4 : vector<1x128xf32> to vector<128x128xf32>
    %6 = arith.addf %3, %5 : vector<128x128xf32>
    %c0_5 = arith.constant 0 : index
    %c0_6 = arith.constant 0 : index
    %7 = vector.load %arg4[%c0_5, %c0_6] : memref<128x128xf32, #tpu.memory_space<vmem>>, vector<128x128xf32>
    tpu.vector_store %arg4[%c0_5, %c0_6], %6 {strides = array<i32>} : memref<128x128xf32, #tpu.memory_space<vmem>>, vector<128x128xf32>,
    return
  }
  func.func @transform_0(%arg0: i32) -> (i32, i32) {
    %c0_i32 = arith.constant 0 : i32
    %c0_i32_0 = arith.constant 0 : i32
    return %arg0, %c0_i32 : i32, i32
  }
  func.func @transform_1(%arg0: i32) -> (i32, i32) {
    %c0_i32 = arith.constant 0 : i32
    %c0_i32_0 = arith.constant 0 : i32
    %c0_i32_1 = arith.constant 0 : i32
    return %c0_i32, %c0_i32_0 : i32, i32
  }
  func.func @transform_2(%arg0: i32) -> (i32, i32) {
    %c0_i32 = arith.constant 0 : i32
    %c0_i32_0 = arith.constant 0 : i32
    %c0_i32_1 = arith.constant 0 : i32
    return %c0_i32, %c0_i32_0 : i32, i32
  }
  func.func @transform_3(%arg0: i32) -> (i32, i32) {
    %c0_i32 = arith.constant 0 : i32
    %c0_i32_0 = arith.constant 0 : i32
    return %arg0, %c0_i32 : i32, i32
  }
}

</mosaic_0001>

<llo_original>
// kernel: encoder_block.3
$region0: #{encoder_block.3}
  #allocation0 [shape = 'u32[]', space=smem, size = 0x4, offset = 0x4, fixed_abs, tag = 'smem constant byte address 0x4 - core index']
  #allocation1 [shape = 'u32[144,128]{1,0:T(1,128)}', space=vmem, size = 0x12000, scoped, tag = 'internal scratch']
  %s0 = inlined_call_operand.vmem [shape: f32[128,128], index: 0, kind: input, shape index: {}]
  %s1 = inlined_call_operand.vmem [shape: f32[1,128], index: 1, kind: input, shape index: {}]
  %s2 = inlined_call_operand.vmem [shape: f32[1,128], index: 2, kind: input, shape index: {}]
  %s3 = inlined_call_operand.hbm [shape: f32[128,128], index: 3, kind: output, shape index: {}]
  %s4 = sld [smem:[#allocation0]]
  $region22: #{encoder_block.3} parent=0
    _
  %s6 = ssub.s32 1, %s4
  %s7 = scalar_select 0, %s6, %s4
  $region1: #{encoder_block.3} parent=0
    #allocation2 [shape = 'u8[65536]{0}', space=vmem, size = 0x10000, scoped, tag = 'output window, operand 0, single buffered']
    #allocation3 [shape = 's32[1]{0}', space=sflag, size = 0x4, scoped, tag = 'scoped memory for encoder_block.3']
    %8 = vsyncpa [#allocation3], 0
    // Predicated region
    $region2: #{encoder_block.3} parent=1 // pred_check
      _
    $region3: #{encoder_block.3} parent=1 // pred_check_branch
      %10 = sbr.rel (0) target = $region5
    $region4: #{encoder_block.3} parent=1 // pred_region
      _
    $region5: #{encoder_block.3} parent=1 // pred_fallthru
      _
    // Predicated region
    $region6: #{encoder_block.3} parent=1 // pred_check
      _
    $region7: #{encoder_block.3} parent=1 // pred_check_branch
      %12 = sbr.rel (0) target = $region9
    $region8: #{encoder_block.3} parent=1 // pred_region
      _
    $region9: #{encoder_block.3} parent=1 // pred_fallthru
      _
    // Predicated region
    $region10: #{encoder_block.3} parent=1 // pred_check
      _
    $region11: #{encoder_block.3} parent=1 // pred_check_branch
      %14 = sbr.rel (0) target = $region13
    $region12: #{encoder_block.3} parent=1 // pred_region
      _
    $region13: #{encoder_block.3} parent=1 // pred_fallthru
      _
    %v15 = vld [vmem:[%s0] sm:$0xff]
    %v16 = vld [vmem:[%s0 + $0x8] sm:$0xff]
    %v17 = vld [vmem:[%s0 + $0x10] sm:$0xff]
    %v18 = vld [vmem:[%s0 + $0x18] sm:$0xff]
    %v19 = vld [vmem:[%s0 + $0x20] sm:$0xff]
    %v20 = vld [vmem:[%s0 + $0x28] sm:$0xff]
    %v21 = vld [vmem:[%s0 + $0x30] sm:$0xff]
    %v22 = vld [vmem:[%s0 + $0x38] sm:$0xff]
    %v23 = vld [vmem:[%s0 + $0x40] sm:$0xff]
    %v24 = vld [vmem:[%s0 + $0x48] sm:$0xff]
    %v25 = vld [vmem:[%s0 + $0x50] sm:$0xff]
    %v26 = vld [vmem:[%s0 + $0x58] sm:$0xff]
    %v27 = vld [vmem:[%s0 + $0x60] sm:$0xff]
    %v28 = vld [vmem:[%s0 + $0x68] sm:$0xff]
    %v29 = vld [vmem:[%s0 + $0x70] sm:$0xff]
    %v30 = vld [vmem:[%s0 + $0x78] sm:$0xff]
    %v31 = vld [vmem:[%s1] sm:$0x1]
    %v33 = vlaneseq
    %v34 = vshrl.u32 %v33, 7
    %v35 = vsub.s32 0, %v34
    %v36 = vrot.slane %v31, %v35
    %v38 = vmul.f32 %v15, %v36
    %v39 = vmul.f32 %v16, %v36
    %v40 = vmul.f32 %v17, %v36
    %v41 = vmul.f32 %v18, %v36
    %v42 = vmul.f32 %v19, %v36
    %v43 = vmul.f32 %v20, %v36
    %v44 = vmul.f32 %v21, %v36
    %v45 = vmul.f32 %v22, %v36
    %v46 = vmul.f32 %v23, %v36
    %v47 = vmul.f32 %v24, %v36
    %v48 = vmul.f32 %v25, %v36
    %v49 = vmul.f32 %v26, %v36
    %v50 = vmul.f32 %v27, %v36
    %v51 = vmul.f32 %v28, %v36
    %v52 = vmul.f32 %v29, %v36
    %v53 = vmul.f32 %v30, %v36
    %v54 = vld [vmem:[%s2] sm:$0x1]
    %v56 = vlaneseq
    %v57 = vshrl.u32 %v56, 7
    %v58 = vsub.s32 0, %v57
    %v59 = vrot.slane %v54, %v58
    %v61 = vadd.f32 %v38, %v59
    %v62 = vadd.f32 %v39, %v59
    %v63 = vadd.f32 %v40, %v59
    %v64 = vadd.f32 %v41, %v59
    %v65 = vadd.f32 %v42, %v59
    %v66 = vadd.f32 %v43, %v59
    %v67 = vadd.f32 %v44, %v59
    %v68 = vadd.f32 %v45, %v59
    %v69 = vadd.f32 %v46, %v59
    %v70 = vadd.f32 %v47, %v59
    %v71 = vadd.f32 %v48, %v59
    %v72 = vadd.f32 %v49, %v59
    %v73 = vadd.f32 %v50, %v59
    %v74 = vadd.f32 %v51, %v59
    %v75 = vadd.f32 %v52, %v59
    %v76 = vadd.f32 %v53, %v59
    %77 = vst [vmem:[#allocation2] sm:$0xff] %v61
    %78 = vst [vmem:[#allocation2 + $0x8] sm:$0xff] %v62
    %79 = vst [vmem:[#allocation2 + $0x10] sm:$0xff] %v63
    %80 = vst [vmem:[#allocation2 + $0x18] sm:$0xff] %v64
    %81 = vst [vmem:[#allocation2 + $0x20] sm:$0xff] %v65
    %82 = vst [vmem:[#allocation2 + $0x28] sm:$0xff] %v66
    %83 = vst [vmem:[#allocation2 + $0x30] sm:$0xff] %v67
    %84 = vst [vmem:[#allocation2 + $0x38] sm:$0xff] %v68
    %85 = vst [vmem:[#allocation2 + $0x40] sm:$0xff] %v69
    %86 = vst [vmem:[#allocation2 + $0x48] sm:$0xff] %v70
    %87 = vst [vmem:[#allocation2 + $0x50] sm:$0xff] %v71
    %88 = vst [vmem:[#allocation2 + $0x58] sm:$0xff] %v72
    %89 = vst [vmem:[#allocation2 + $0x60] sm:$0xff] %v73
    %90 = vst [vmem:[#allocation2 + $0x68] sm:$0xff] %v74
    %91 = vst [vmem:[#allocation2 + $0x70] sm:$0xff] %v75
    %92 = vst [vmem:[#allocation2 + $0x78] sm:$0xff] %v76
    // Predicated region
    $region14: #{encoder_block.3} parent=1 // pred_check
      _
    $region15: #{encoder_block.3} parent=1 // pred_check_branch
      %94 = sbr.rel (0) target = $region17
    $region16: #{encoder_block.3} parent=1 // pred_region
      %s96 = ssub.s32 2048, 2048
      %97 = vsyncadd [#allocation3], %s96
      %s98 = sshll.u32 [#allocation2], 4
      %s99 = int_to_ptr.vmem [resolvable:$true] %s98
      %104 = dma.vmem_to_hbm [thread:$0]  %s99, 2048, %s3, [#allocation3], 128, 128, 8
    $region17: #{encoder_block.3} parent=1 // pred_fallthru
      _
    // Predicated region
    $region18: #{encoder_block.3} parent=1 // pred_check
      _
    $region19: #{encoder_block.3} parent=1 // pred_check_branch
      %106 = sbr.rel (0) target = $region21
    $region20: #{encoder_block.3} parent=1 // pred_region
      %107 = dma.done [#allocation3], 2048
    $region21: #{encoder_block.3} parent=1 // pred_fallthru
      _
    %108 = vsyncpa [#allocation3], 1

// kernel: encoder_block.2
$region0: #{encoder_block.2}
  #allocation0 [shape = 'u32[]', space=smem, size = 0x4, offset = 0x4, fixed_abs, tag = 'smem constant byte address 0x4 - core index']
  #allocation1 [shape = 'u32[144,128]{1,0:T(1,128)}', space=vmem, size = 0x12000, scoped, tag = 'internal scratch']
  %s0 = inlined_call_operand.vmem [shape: bf16[128,128], index: 0, kind: input, shape index: {}]
  %s1 = inlined_call_operand.vmem [shape: bf16[128,128], index: 1, kind: input, shape index: {}]
  %s2 = inlined_call_operand.vmem [shape: f32[128,128], index: 2, kind: output, shape index: {0}]
  %s3 = inlined_call_operand.vmem [shape: f32[2,128], index: 3, kind: output, shape index: {1}]
  %4 = xla_tuple %s2, %s3
  %s5 = sld [smem:[#allocation0]]
  $region30: #{encoder_block.2} parent=0
    _
  %s7 = ssub.s32 1, %s5
  %s8 = scalar_select 0, %s7, %s5
  // Predicated region
  $region2: #{encoder_block.2} parent=0 // pred_check
    _
  $region3: #{encoder_block.2} parent=0 // pred_check_branch
    %10 = sbr.rel (0) target = $region5
  $region4: #{encoder_block.2} parent=0 // pred_region
    _
  $region5: #{encoder_block.2} parent=0 // pred_fallthru
    _
  // Predicated region
  $region6: #{encoder_block.2} parent=0 // pred_check
    _
  $region7: #{encoder_block.2} parent=0 // pred_check_branch
    %12 = sbr.rel (0) target = $region9
  $region8: #{encoder_block.2} parent=0 // pred_region
    _
  $region9: #{encoder_block.2} parent=0 // pred_fallthru
    _
  %p14 = scmp.eq.s32.totalorder 0, 0
  // Predicated region
  $region10: #{encoder_block.2} parent=0 // pred_check
    %p15 = pneg %p14
  $region11: #{encoder_block.2} parent=0 // pred_check_branch
    %17 = sbr.rel (%p15) target = $region13
  $region12: #{encoder_block.2} parent=0 // pred_region
    %18 = vst [vmem:[%s3] sm:$0x3] 0.0
  $region13: #{encoder_block.2} parent=0 // pred_fallthru
    _
  %v19 = vld [vmem:[%s0] sm:$0xf]
  %v20 = vld [vmem:[%s0 + $0x4] sm:$0xf]
  %v21 = vld [vmem:[%s0 + $0x8] sm:$0xf]
  %v22 = vld [vmem:[%s0 + $0xc] sm:$0xf]
  %v23 = vld [vmem:[%s0 + $0x10] sm:$0xf]
  %v24 = vld [vmem:[%s0 + $0x14] sm:$0xf]
  %v25 = vld [vmem:[%s0 + $0x18] sm:$0xf]
  %v26 = vld [vmem:[%s0 + $0x1c] sm:$0xf]
  %v27 = vld [vmem:[%s0 + $0x20] sm:$0xf]
  %v28 = vld [vmem:[%s0 + $0x24] sm:$0xf]
  %v29 = vld [vmem:[%s0 + $0x28] sm:$0xf]
  %v30 = vld [vmem:[%s0 + $0x2c] sm:$0xf]
  %v31 = vld [vmem:[%s0 + $0x30] sm:$0xf]
  %v32 = vld [vmem:[%s0 + $0x34] sm:$0xf]
  %v33 = vld [vmem:[%s0 + $0x38] sm:$0xf]
  %v34 = vld [vmem:[%s0 + $0x3c] sm:$0xf]
  %v35 = vld [vmem:[%s1] sm:$0xf]
  %v36 = vld [vmem:[%s1 + $0x4] sm:$0xf]
  %v37 = vld [vmem:[%s1 + $0x8] sm:$0xf]
  %v38 = vld [vmem:[%s1 + $0xc] sm:$0xf]
  %v39 = vld [vmem:[%s1 + $0x10] sm:$0xf]
  %v40 = vld [vmem:[%s1 + $0x14] sm:$0xf]
  %v41 = vld [vmem:[%s1 + $0x18] sm:$0xf]
  %v42 = vld [vmem:[%s1 + $0x1c] sm:$0xf]
  %v43 = vld [vmem:[%s1 + $0x20] sm:$0xf]
  %v44 = vld [vmem:[%s1 + $0x24] sm:$0xf]
  %v45 = vld [vmem:[%s1 + $0x28] sm:$0xf]
  %v46 = vld [vmem:[%s1 + $0x2c] sm:$0xf]
  %v47 = vld [vmem:[%s1 + $0x30] sm:$0xf]
  %v48 = vld [vmem:[%s1 + $0x34] sm:$0xf]
  %v49 = vld [vmem:[%s1 + $0x38] sm:$0xf]
  %v50 = vld [vmem:[%s1 + $0x3c] sm:$0xf]
  %v67 = vunpack.c.l.b16 %v19
  %v68 = vunpack.c.l.b16 %v20
  %v69 = vunpack.c.l.b16 %v21
  %v70 = vunpack.c.l.b16 %v22
  %v71 = vunpack.c.l.b16 %v23
  %v72 = vunpack.c.l.b16 %v24
  %v73 = vunpack.c.l.b16 %v25
  %v74 = vunpack.c.l.b16 %v26
  %v75 = vunpack.c.l.b16 %v27
  %v76 = vunpack.c.l.b16 %v28
  %v77 = vunpack.c.l.b16 %v29
  %v78 = vunpack.c.l.b16 %v30
  %v79 = vunpack.c.l.b16 %v31
  %v80 = vunpack.c.l.b16 %v32
  %v81 = vunpack.c.l.b16 %v33
  %v82 = vunpack.c.l.b16 %v34
  %v83 = vpack.c.b16 %v68, %v67
  %v84 = vpack.c.b16 %v70, %v69
  %v85 = vpack.c.b16 %v72, %v71
  %v86 = vpack.c.b16 %v74, %v73
  %v87 = vpack.c.b16 %v76, %v75
  %v88 = vpack.c.b16 %v78, %v77
  %v89 = vpack.c.b16 %v80, %v79
  %v90 = vpack.c.b16 %v82, %v81
  %v115 = vunpack.c.l.b16 %v35
  %v116 = vunpack.c.l.b16 %v36
  %v117 = vunpack.c.l.b16 %v37
  %v118 = vunpack.c.l.b16 %v38
  %v119 = vunpack.c.l.b16 %v39
  %v120 = vunpack.c.l.b16 %v40
  %v121 = vunpack.c.l.b16 %v41
  %v122 = vunpack.c.l.b16 %v42
  %v123 = vunpack.c.l.b16 %v43
  %v124 = vunpack.c.l.b16 %v44
  %v125 = vunpack.c.l.b16 %v45
  %v126 = vunpack.c.l.b16 %v46
  %v127 = vunpack.c.l.b16 %v47
  %v128 = vunpack.c.l.b16 %v48
  %v129 = vunpack.c.l.b16 %v49
  %v130 = vunpack.c.l.b16 %v50
  %v131 = vpack.c.b16 %v116, %v115
  %v132 = vpack.c.b16 %v118, %v117
  %v133 = vpack.c.b16 %v120, %v119
  %v134 = vpack.c.b16 %v122, %v121
  %v135 = vpack.c.b16 %v124, %v123
  %v136 = vpack.c.b16 %v126, %v125
  %v137 = vpack.c.b16 %v128, %v127
  %v138 = vpack.c.b16 %v130, %v129
  %147 = vmatprep.subr.bf16.mxu0 0
  %148 = vmatpush1.bf16.msra.mxu0 %v131
  %149 = vmatprep.subr.bf16.mxu0 0
  %150 = vmatpush1.bf16.msra.mxu0 %v132
  %151 = vmatprep.subr.bf16.mxu0 0
  %152 = vmatpush1.bf16.msra.mxu0 %v133
  %153 = vmatprep.subr.bf16.mxu0 0
  %154 = vmatpush1.bf16.msra.mxu0 %v134
  %155 = vmatprep.subr.bf16.mxu0 0
  %156 = vmatpush1.bf16.msra.mxu0 %v135
  %157 = vmatprep.subr.bf16.mxu0 0
  %158 = vmatpush1.bf16.msra.mxu0 %v136
  %159 = vmatprep.subr.bf16.mxu0 0
  %160 = vmatpush1.bf16.msra.mxu0 %v137
  %161 = vmatprep.subr.bf16.mxu0 0
  %162 = vmatpush1.bf16.msra.mxu0 %v138
  %163 = vmatprep.subr.bf16.mxu0 0
  %164 = vmatpush1.bf16.msra.mxu0 0
  %165 = vmatprep.subr.bf16.mxu0 0
  %166 = vmatpush1.bf16.msra.mxu0 0
  %167 = vmatprep.subr.bf16.mxu0 0
  %168 = vmatpush1.bf16.msra.mxu0 0
  %169 = vmatprep.subr.bf16.mxu0 0
  %170 = vmatpush1.bf16.msra.mxu0 0
  %171 = vmatprep.subr.bf16.mxu0 0
  %172 = vmatpush1.bf16.msra.mxu0 0
  %173 = vmatprep.subr.bf16.mxu0 0
  %174 = vmatpush1.bf16.msra.mxu0 0
  %175 = vmatprep.subr.bf16.mxu0 0
  %176 = vmatpush1.bf16.msra.mxu0 0
  %177 = vmatprep.subr.bf16.mxu0 0
  %178 = vmatpush1.bf16.msra.mxu0 0
  %179 = vmatprep.mubr.bf16.mxu0 0
  %180 = vmatmul.mubr.bf16.gmra.mrb[0].mxu0 %v83
  %v181 = vpop.f32.mrb[0].mxu0
  %v182 = vadd.f32 0.0, %v181
  %v183 = vpop.f32.mrb[0].mxu0
  %v184 = vpop.f32.mrb[0].mxu0
  %v185 = vadd.f32 0.0, %v184
  %v186 = vpop.f32.mrb[0].mxu0
  %187 = vmatprep.mubr.bf16.mxu0 0
  %188 = vmatmul.mubr.bf16.gmra.mrb[0].mxu0 %v84
  %v189 = vpop.f32.mrb[0].mxu0
  %v190 = vadd.f32 0.0, %v189
  %v191 = vpop.f32.mrb[0].mxu0
  %v192 = vpop.f32.mrb[0].mxu0
  %v193 = vadd.f32 0.0, %v192
  %v194 = vpop.f32.mrb[0].mxu0
  %195 = vmatprep.mubr.bf16.mxu0 0
  %196 = vmatmul.mubr.bf16.gmra.mrb[0].mxu0 %v85
  %v197 = vpop.f32.mrb[0].mxu0
  %v198 = vadd.f32 0.0, %v197
  %v199 = vpop.f32.mrb[0].mxu0
  %v200 = vpop.f32.mrb[0].mxu0
  %v201 = vadd.f32 0.0, %v200
  %v202 = vpop.f32.mrb[0].mxu0
  %203 = vmatprep.mubr.bf16.mxu0 0
  %204 = vmatmul.mubr.bf16.gmra.mrb[0].mxu0 %v86
  %v205 = vpop.f32.mrb[0].mxu0
  %v206 = vadd.f32 0.0, %v205
  %v207 = vpop.f32.mrb[0].mxu0
  %v208 = vpop.f32.mrb[0].mxu0
  %v209 = vadd.f32 0.0, %v208
  %v210 = vpop.f32.mrb[0].mxu0
  %211 = vmatprep.mubr.bf16.mxu0 0
  %212 = vmatmul.mubr.bf16.gmra.mrb[0].mxu0 %v87
  %v213 = vpop.f32.mrb[0].mxu0
  %v214 = vadd.f32 0.0, %v213
  %v215 = vpop.f32.mrb[0].mxu0
  %v216 = vpop.f32.mrb[0].mxu0
  %v217 = vadd.f32 0.0, %v216
  %v218 = vpop.f32.mrb[0].mxu0
  %219 = vmatprep.mubr.bf16.mxu0 0
  %220 = vmatmul.mubr.bf16.gmra.mrb[0].mxu0 %v88
  %v221 = vpop.f32.mrb[0].mxu0
  %v222 = vadd.f32 0.0, %v221
  %v223 = vpop.f32.mrb[0].mxu0
  %v224 = vpop.f32.mrb[0].mxu0
  %v225 = vadd.f32 0.0, %v224
  %v226 = vpop.f32.mrb[0].mxu0
  %227 = vmatprep.mubr.bf16.mxu0 0
  %228 = vmatmul.mubr.bf16.gmra.mrb[0].mxu0 %v89
  %v229 = vpop.f32.mrb[0].mxu0
  %v230 = vadd.f32 0.0, %v229
  %v231 = vpop.f32.mrb[0].mxu0
  %v232 = vpop.f32.mrb[0].mxu0
  %v233 = vadd.f32 0.0, %v232
  %v234 = vpop.f32.mrb[0].mxu0
  %235 = vmatprep.mubr.bf16.mxu0 0
  %236 = vmatmul.mubr.bf16.gmra.mrb[0].mxu0 %v90
  %v237 = vpop.f32.mrb[0].mxu0
  %v238 = vadd.f32 0.0, %v237
  %v239 = vpop.f32.mrb[0].mxu0
  %v240 = vpop.f32.mrb[0].mxu0
  %v241 = vadd.f32 0.0, %v240
  %v242 = vpop.f32.mrb[0].mxu0
  %243 = vdwg.mxu0
  %v244 = vmax.f32 %v182, 0.0
  %v245 = vmax.f32 %v185, 0.0
  %v246 = vmax.f32 %v190, 0.0
  %v247 = vmax.f32 %v193, 0.0
  %v248 = vmax.f32 %v198, 0.0
  %v249 = vmax.f32 %v201, 0.0
  %v250 = vmax.f32 %v206, 0.0
  %v251 = vmax.f32 %v209, 0.0
  %v252 = vmax.f32 %v214, 0.0
  %v253 = vmax.f32 %v217, 0.0
  %v254 = vmax.f32 %v222, 0.0
  %v255 = vmax.f32 %v225, 0.0
  %v256 = vmax.f32 %v230, 0.0
  %v257 = vmax.f32 %v233, 0.0
  %v258 = vmax.f32 %v238, 0.0
  %v259 = vmax.f32 %v241, 0.0
  %260 = vst [vmem:[%s2] sm:$0xff] %v244
  %261 = vst [vmem:[%s2 + $0x8] sm:$0xff] %v245
  %262 = vst [vmem:[%s2 + $0x10] sm:$0xff] %v246
  %263 = vst [vmem:[%s2 + $0x18] sm:$0xff] %v247
  %264 = vst [vmem:[%s2 + $0x20] sm:$0xff] %v248
  %265 = vst [vmem:[%s2 + $0x28] sm:$0xff] %v249
  %266 = vst [vmem:[%s2 + $0x30] sm:$0xff] %v250
  %267 = vst [vmem:[%s2 + $0x38] sm:$0xff] %v251
  %268 = vst [vmem:[%s2 + $0x40] sm:$0xff] %v252
  %269 = vst [vmem:[%s2 + $0x48] sm:$0xff] %v253
  %270 = vst [vmem:[%s2 + $0x50] sm:$0xff] %v254
  %271 = vst [vmem:[%s2 + $0x58] sm:$0xff] %v255
  %272 = vst [vmem:[%s2 + $0x60] sm:$0xff] %v256
  %273 = vst [vmem:[%s2 + $0x68] sm:$0xff] %v257
  %274 = vst [vmem:[%s2 + $0x70] sm:$0xff] %v258
  %275 = vst [vmem:[%s2 + $0x78] sm:$0xff] %v259
  %v276 = vadd.f32 %v244, %v245
  %v277 = vadd.f32 %v276, %v246
  %v278 = vadd.f32 %v277, %v247
  %v279 = vadd.f32 %v278, %v248
  %v280 = vadd.f32 %v279, %v249
  %v281 = vadd.f32 %v280, %v250
  %v282 = vadd.f32 %v281, %v251
  %v283 = vadd.f32 %v282, %v252
  %v284 = vadd.f32 %v283, %v253
  %v285 = vadd.f32 %v284, %v254
  %v286 = vadd.f32 %v285, %v255
  %v287 = vadd.f32 %v286, %v256
  %v288 = vadd.f32 %v287, %v257
  %v289 = vadd.f32 %v288, %v258
  %v290 = vadd.f32 %v289, %v259
  %v291 = vrot.slane %v290, 4
  %v292 = vadd.f32 %v290, %v291
  %v293 = vrot.slane %v292, 2
  %v294 = vadd.f32 %v292, %v293
  %v295 = vrot.slane %v294, 1
  %v296 = vadd.f32 %v294, %v295
  %v297 = vmul.f32 %v244, %v244
  %v298 = vmul.f32 %v245, %v245
  %v299 = vmul.f32 %v246, %v246
  %v300 = vmul.f32 %v247, %v247
  %v301 = vmul.f32 %v248, %v248
  %v302 = vmul.f32 %v249, %v249
  %v303 = vmul.f32 %v250, %v250
  %v304 = vmul.f32 %v251, %v251
  %v305 = vmul.f32 %v252, %v252
  %v306 = vmul.f32 %v253, %v253
  %v307 = vmul.f32 %v254, %v254
  %v308 = vmul.f32 %v255, %v255
  %v309 = vmul.f32 %v256, %v256
  %v310 = vmul.f32 %v257, %v257
  %v311 = vmul.f32 %v258, %v258
  %v312 = vmul.f32 %v259, %v259
  %v313 = vadd.f32 %v297, %v298
  %v314 = vadd.f32 %v313, %v299
  %v315 = vadd.f32 %v314, %v300
  %v316 = vadd.f32 %v315, %v301
  %v317 = vadd.f32 %v316, %v302
  %v318 = vadd.f32 %v317, %v303
  %v319 = vadd.f32 %v318, %v304
  %v320 = vadd.f32 %v319, %v305
  %v321 = vadd.f32 %v320, %v306
  %v322 = vadd.f32 %v321, %v307
  %v323 = vadd.f32 %v322, %v308
  %v324 = vadd.f32 %v323, %v309
  %v325 = vadd.f32 %v324, %v310
  %v326 = vadd.f32 %v325, %v311
  %v327 = vadd.f32 %v326, %v312
  %v328 = vrot.slane %v327, 4
  %v329 = vadd.f32 %v327, %v328
  %v330 = vrot.slane %v329, 2
  %v331 = vadd.f32 %v329, %v330
  %v332 = vrot.slane %v331, 1
  %v333 = vadd.f32 %v331, %v332
  %v334 = vld [vmem:[%s3] sm:$0x3]
  %vm335 = vcmask 1040384
  %v336 = vsel %vm335, %v296, %v333
  %v337 = vadd.f32 %v334, %v336
  %338 = vst [vmem:[%s3] sm:$0x3] %v337
  // Predicated region
  $region14: #{encoder_block.2} parent=0 // pred_check
    _
  $region15: #{encoder_block.2} parent=0 // pred_check_branch
    %340 = sbr.rel (0) target = $region17
  $region16: #{encoder_block.2} parent=0 // pred_region
    _
  $region17: #{encoder_block.2} parent=0 // pred_fallthru
    _
  // Predicated region
  $region18: #{encoder_block.2} parent=0 // pred_check
    _
  $region19: #{encoder_block.2} parent=0 // pred_check_branch
    %342 = sbr.rel (0) target = $region21
  $region20: #{encoder_block.2} parent=0 // pred_region
    _
  $region21: #{encoder_block.2} parent=0 // pred_fallthru
    _
  // Predicated region
  $region22: #{encoder_block.2} parent=0 // pred_check
    _
  $region23: #{encoder_block.2} parent=0 // pred_check_branch
    %344 = sbr.rel (0) target = $region25
  $region24: #{encoder_block.2} parent=0 // pred_region
    _
  $region25: #{encoder_block.2} parent=0 // pred_fallthru
    _
  // Predicated region
  $region26: #{encoder_block.2} parent=0 // pred_check
    _
  $region27: #{encoder_block.2} parent=0 // pred_check_branch
    %346 = sbr.rel (0) target = $region29
  $region28: #{encoder_block.2} parent=0 // pred_region
    _
  $region29: #{encoder_block.2} parent=0 // pred_fallthru
    _

</llo_original>
